<compile_context>
chip_gen: v5e
topology: v5e:2x2
jax: 0.10.0
libtpu: 0.0.40
codegen_flags: <defaults>
</compile_context>

<pallas_src>
import functools

import jax
import jax.numpy as jnp
from jax.experimental import pallas as pl
from jax.experimental.pallas import tpu as pltpu


def _round_up(x, m):
    return (x + m - 1) // m * m


def _cdiv(a, b):
    return -(-a // b)


def _pad2d(a, rows, cols):
    r, c = a.shape
    if r == rows and c == cols:
        return a
    return jnp.pad(a, ((0, rows - r), (0, cols - c)))


def _pick_tile(dim, default, align=128):
    """Largest multiple of `align` that divides `dim` (itself `align`-aligned)
    and is <= max(default, align)."""
    best = align
    t = align
    hi = min(default, dim)
    while t <= hi:
        if dim % t == 0:
            best = t
        t += align
    return best


def _vmem_budget_bytes():
    """Generation-aware VMEM budget: ~75% of capacity, >=16 MiB headroom."""
    cap = 64 * 2**20  # conservative fallback (v7x physical)
    try:
        info = pltpu.get_tpu_info()
        cap = int(getattr(info, "vmem_capacity_bytes", cap)) or cap
    except Exception:
        pass
    return int(max(min(cap * 3 // 4, cap - 16 * 2**20), 16 * 2**20))


# -----------------------------------------------------------------------------
# Generic tiled linear: y = x @ w + b (optional fused ReLU)
# grid = (M/tm, N/tn, K/tk); K is the reduction axis (f32 accumulator scratch);
# bias + activation applied once in the finalize branch.  MXU in `mxu_dtype`.
# -----------------------------------------------------------------------------
def _linear_kernel(x_ref, w_ref, b_ref, o_ref, acc_ref, *, apply_relu, mxu_dtype):
    k = pl.program_id(2)

    @pl.when(k == 0)
    def _():
        acc_ref[...] = jnp.zeros_like(acc_ref)

    acc_ref[...] += jnp.dot(x_ref[...].astype(mxu_dtype),
                            w_ref[...].astype(mxu_dtype),
                            preferred_element_type=jnp.float32)

    @pl.when(k == pl.num_programs(2) - 1)
    def _():
        out = acc_ref[...] + b_ref[...]
        if apply_relu:
            out = jnp.maximum(out, 0.0)
        o_ref[...] = out.astype(o_ref.dtype)


def pallas_linear(x, w, b, *, apply_relu=False, mxu_dtype=jnp.bfloat16,
                  tm=512, tn=512, tk=1024):
    """y = x @ w + b.  x:(M,Kp), w:(Kp,Np), b:(1,Np); Kp, Np already 128-aligned."""
    M, Kp = x.shape
    Kp2, Np = w.shape
    assert Kp == Kp2 and b.shape == (1, Np)
    assert Kp % 128 == 0 and Np % 128 == 0

    x_itm = jnp.dtype(x.dtype).itemsize
    w_itm = jnp.dtype(w.dtype).itemsize
    o_itm = jnp.dtype(x.dtype).itemsize

    budget = _vmem_budget_bytes()
    tm = max(8, min(_round_up(tm, 8), _round_up(M, 8)))
    tn = _pick_tile(Np, tn)
    tk = _pick_tile(Kp, tk)

    def working_set(tm_, tn_, tk_):
        ins = tm_ * tk_ * x_itm + tk_ * tn_ * w_itm + tn_ * 4
        return 2 * ins + 2 * tm_ * tn_ * o_itm + tm_ * tn_ * 4

    while working_set(tm, tn, tk) > budget and tk > 128:
        tk = _pick_tile(Kp, tk // 2)
    while working_set(tm, tn, tk) > budget and tn > 128:
        tn = _pick_tile(Np, tn // 2)
    while working_set(tm, tn, tk) > budget and tm > 8:
        tm = _round_up(tm // 2, 8)

    Mp = _round_up(M, tm)
    xp = x if Mp == M else jnp.pad(x, ((0, Mp - M), (0, 0)))

    cost = pl.CostEstimate(
        flops=2 * Mp * Kp * Np,
        transcendentals=0,
        bytes_accessed=(Mp * Kp * x_itm + Kp * Np * w_itm + Np * 4
                        + Mp * Np * o_itm))

    kernel = functools.partial(_linear_kernel, apply_relu=apply_relu,
                               mxu_dtype=mxu_dtype)
    out = pl.pallas_call(
        kernel,
        out_shape=jax.ShapeDtypeStruct((Mp, Np), x.dtype),
        grid_spec=pltpu.PrefetchScalarGridSpec(
            num_scalar_prefetch=0,
            grid=(Mp // tm, Np // tn, Kp // tk),
            in_specs=[
                pl.BlockSpec((tm, tk), lambda i, j, k: (i, k)),
                # TODO(synk): sweep pipeline_mode=pl.Buffered(3) on this weight
                # stripe once profiles show exposed DMA time.
                pl.BlockSpec((tk, tn), lambda i, j, k: (k, j)),
                pl.BlockSpec((1, tn), lambda i, j, k: (0, j)),
            ],
            out_specs=pl.BlockSpec((tm, tn), lambda i, j, k: (i, j)),
            scratch_shapes=[pltpu.VMEM((tm, tn), jnp.float32)],
        ),
        compiler_params=pltpu.CompilerParams(
            dimension_semantics=("parallel", "parallel", "arbitrary"),
            vmem_limit_bytes=budget,
        ),
        cost_estimate=cost,
    )(xp, w, b)
    return out[:M, :]


# -----------------------------------------------------------------------------
# Fused transformer-MLP layer: y = relu(x @ w1 + b1) @ w2 + b2
# grid = (M/tm, Hout/th, F/tf); f (the 4H dim) is the reduction axis of the
# second matmul (f32 accumulator scratch), th tiles the output hidden so the
# working set no longer scales with the full Hp on v7x and extra parallel
# slices exist for both TensorCores.  The (tm, tf) intermediate never touches
# HBM.  MXU runs in `mxu_dtype` with f32 accumulation.
# -----------------------------------------------------------------------------
def _fused_layer_kernel(x_ref, w1_ref, b1_ref, w2_ref, b2_ref, o_ref, acc_ref,
                        *, mxu_dtype):
    f = pl.program_id(2)

    @pl.when(f == 0)
    def _():
        acc_ref[...] = jnp.zeros_like(acc_ref)

    # TODO(synk): optional fp8 weight path on v7x (offline-quantized weights,
    # f32 accumulation) would double MXU rate over bf16 if accuracy allows.
    mid = jnp.dot(x_ref[...].astype(mxu_dtype), w1_ref[...].astype(mxu_dtype),
                  preferred_element_type=jnp.float32)
    mid = jnp.maximum(mid + b1_ref[...], 0.0)
    # Cast `mid` DOWN to the MXU dtype (do not promote w2 to f32).
    acc_ref[...] += jnp.dot(mid.astype(mxu_dtype), w2_ref[...].astype(mxu_dtype),
                            preferred_element_type=jnp.float32)

    @pl.when(f == pl.num_programs(2) - 1)
    def _():
        o_ref[...] = (acc_ref[...] + b2_ref[...]).astype(o_ref.dtype)


def pallas_fused_layer(x, w1, b1, w2, b2, *, mxu_dtype=jnp.bfloat16,
                       tm=512, tf=1024, th=None):
    """y = relu(x @ w1 + b1) @ w2 + b2, one pallas_call.
    x:(M,Hin), w1:(Hin,Fp), b1:(1,Fp), w2:(Fp,Hout), b2:(1,Hout); all padded dims
    128-aligned."""
    M, Hin = x.shape
    Hin2, Fp = w1.shape
    Fp2, Hout = w2.shape
    assert Hin == Hin2 and Fp == Fp2
    assert b1.shape == (1, Fp) and b2.shape == (1, Hout)
    assert Hin % 128 == 0 and Fp % 128 == 0 and Hout % 128 == 0

    x_itm = jnp.dtype(x.dtype).itemsize
    w_itm = jnp.dtype(w1.dtype).itemsize
    o_itm = jnp.dtype(x.dtype).itemsize

    budget = _vmem_budget_bytes()
    tm = max(8, min(_round_up(tm, 8), _round_up(M, 8)))
    tf = _pick_tile(Fp, tf)
    th = Hout if th is None else _pick_tile(Hout, th)

    def working_set(tm_, tf_, th_):
        ins = (tm_ * Hin * x_itm            # x block (resident across h, f)
               + Hin * tf_ * w_itm + tf_ * 4   # w1 stripe, b1
               + tf_ * th_ * w_itm + th_ * 4)  # w2 tile, b2
        return 2 * ins + 2 * tm_ * th_ * o_itm + tm_ * th_ * 4

    # Shrink to the VMEM budget: tf first, then tile the output H, then tm.
    while working_set(tm, tf, th) > budget and tf > 128:
        tf = _pick_tile(Fp, tf // 2)
    while working_set(tm, tf, th) > budget and th > 128:
        th = _pick_tile(Hout, th // 2)
    while working_set(tm, tf, th) > budget and tm > 8:
        tm = _round_up(tm // 2, 8)
    # TODO(synk): the first matmul's K (Hin) stays untiled; for extremely large
    # H in f32 a fourth reduction axis over Hin would be needed.

    # v7x: guarantee >= 2 parallel grid slices so both TensorCores get work.
    while _cdiv(M, tm) * (Hout // th) < 2 and tm > 8:
        tm = _round_up(tm // 2, 8)

    Mp = _round_up(M, tm)
    xp = x if Mp == M else jnp.pad(x, ((0, Mp - M), (0, 0)))

    n_h = Hout // th  # th < Hout recomputes the first matmul n_h times
    cost = pl.CostEstimate(
        flops=2 * Mp * Hin * Fp * n_h + 2 * Mp * Fp * Hout,
        transcendentals=0,
        bytes_accessed=((Mp * Hin + Mp * Hout) * o_itm
                        + (Hin * Fp + Fp * Hout) * w_itm + (Fp + Hout) * 4))

    kernel = functools.partial(_fused_layer_kernel, mxu_dtype=mxu_dtype)
    out = pl.pallas_call(
        kernel,
        out_shape=jax.ShapeDtypeStruct((Mp, Hout), x.dtype),
        grid_spec=pltpu.PrefetchScalarGridSpec(
            num_scalar_prefetch=0,
            grid=(Mp // tm, Hout // th, Fp // tf),
            in_specs=[
                pl.BlockSpec((tm, Hin), lambda m, h, f: (m, 0)),   # x (resident)
                # TODO(synk): sweep pipeline_mode=pl.Buffered(3) on w1/w2 stripes
                # once profiles show exposed DMA time.
                pl.BlockSpec((Hin, tf), lambda m, h, f: (0, f)),   # w1 stripe
                pl.BlockSpec((1, tf), lambda m, h, f: (0, f)),     # b1 stripe
                pl.BlockSpec((tf, th), lambda m, h, f: (f, h)),    # w2 tile
                pl.BlockSpec((1, th), lambda m, h, f: (0, h)),     # b2 tile
            ],
            out_specs=pl.BlockSpec((tm, th), lambda m, h, f: (m, h)),
            scratch_shapes=[pltpu.VMEM((tm, th), jnp.float32)],
        ),
        compiler_params=pltpu.CompilerParams(
            dimension_semantics=("parallel", "parallel", "arbitrary"),
            vmem_limit_bytes=budget,
        ),
        cost_estimate=cost,
    )(xp, w1, b1, w2, b2)
    return out[:M, :]


# -----------------------------------------------------------------------------
# Parameters / model
# -----------------------------------------------------------------------------
def init_params(key, hidden_size, layer_num, dtype=jnp.float32, weight_dtype=None):
    """Deterministic init mirroring the PyTorch module's parameter shapes.

    Weights are stored transposed (in_features, out_features) and ALREADY padded
    to 128-aligned shapes (padding hoisted out of the forward path).  Set
    weight_dtype=jnp.bfloat16 to also halve HBM weight traffic.
    """
    weight_dtype = weight_dtype or dtype
    H = hidden_size
    F = 4 * hidden_size
    Hp = _round_up(H, 128)
    Fp = _round_up(F, 128)
    params = {}
    k = key

    def uniform(k, shape, fan_in):
        bound = 1.0 / (fan_in ** 0.5)
        return jax.random.uniform(k, shape, dtype, -bound, bound)

    # embedding: Linear(hidden, hidden)
    k, k1, k2 = jax.random.split(k, 3)
    params["emb_w"] = _pad2d(uniform(k1, (H, H), H).astype(weight_dtype), Hp, Hp)
    params["emb_b"] = _pad2d(uniform(k2, (H,), H).reshape(1, H), 1, Hp)

    # NOTE: buffers `pe` and `freqs` are zeros and unused in forward — omitted.
    params["layers"] = []
    for _ in range(layer_num):
        k, k1, k2, k3, k4 = jax.random.split(k, 5)
        layer = {
            "w1": _pad2d(uniform(k1, (H, F), H).astype(weight_dtype), Hp, Fp),
            "b1": _pad2d(uniform(k2, (F,), H).reshape(1, F), 1, Fp),
            "w2": _pad2d(uniform(k3, (F, H), F).astype(weight_dtype), Fp, Hp),
            "b2": _pad2d(uniform(k4, (H,), F).reshape(1, H), 1, Hp),
        }
        params["layers"].append(layer)
    return params


def model_forward(params, x, *, mxu_dtype=jnp.bfloat16):
    """Equivalent of Model(hidden, layer_num).forward(x) with x: (B, S, H)."""
    B, S, H = x.shape
    M = B * S
    Hp = params["emb_w"].shape[0]
    h = x.reshape(M, H)
    if Hp != H:  # pad activation columns once; stays padded across layers
        h = jnp.pad(h, ((0, 0), (0, Hp - H)))
    # embedding
    h = pallas_linear(h, params["emb_w"], params["emb_b"],
                      apply_relu=False, mxu_dtype=mxu_dtype)
    # each Layer: net2(relu(net1(x))) fused into one kernel
    for layer in params["layers"]:
        h = pallas_fused_layer(h, layer["w1"], layer["b1"],
                               layer["w2"], layer["b2"], mxu_dtype=mxu_dtype)
    return h[:, :H].reshape(B, S, H)


def model_forward_ref(params, x, *, mxu_dtype=jnp.float32):
    """Pure-JAX reference (uses the UNPADDED logical slices of the weights,
    mirroring the kernel's cast-to-mxu_dtype / accumulate-in-f32 behavior)."""
    B, S, H = x.shape
    F = 4 * H
    h = x.reshape(B * S, H)

    def mm(a, b):
        return jnp.dot(a.astype(mxu_dtype), b.astype(mxu_dtype),
                       preferred_element_type=jnp.float32)

    h = mm(h, params["emb_w"][:H, :H]) + params["emb_b"][0, :H]
    for layer in params["layers"]:
        mid = jnp.maximum(mm(h, layer["w1"][:H, :F]) + layer["b1"][0, :F], 0.0)
        h = mm(mid, layer["w2"][:F, :H]) + layer["b2"][0, :H]
    return h.reshape(B, S, H)


if __name__ == "__main__":
    hidden_size = 32
    layer_num = 2
    batch, seq = 2, 8

    key = jax.random.PRNGKey(0)
    k_params, k_x = jax.random.split(key)
    params = init_params(k_params, hidden_size, layer_num)
    x = jax.random.normal(k_x, (batch, seq, hidden_size), dtype=jnp.float32)

    # Fast path: bf16 operands on the MXU, f32 accumulation.
    out = jax.block_until_ready(model_forward(params, x, mxu_dtype=jnp.bfloat16))
    ref = model_forward_ref(params, x, mxu_dtype=jnp.bfloat16)
    assert out.shape == (batch, seq, hidden_size)
    assert jnp.allclose(out, ref, atol=1e-2, rtol=1e-2), float(
        jnp.max(jnp.abs(out - ref)))

    # Strict f32 path for exact correctness.
    out32 = jax.block_until_ready(model_forward(params, x, mxu_dtype=jnp.float32))
    ref32 = model_forward_ref(params, x, mxu_dtype=jnp.float32)
    assert jnp.allclose(out32, ref32, atol=1e-5, rtol=1e-5), float(
        jnp.max(jnp.abs(out32 - ref32)))

    print("KERNEL_OK")
</pallas_src>

<mosaic_0001>
module attributes {stable_mosaic.version = 11 : i64} {
  func.func @_linear_kernel(%arg0: i32, %arg1: i32, %arg2: i32, %arg3: memref<16x128xf32, #tpu.memory_space<vmem>>, %arg4: memref<128x128xf32, #tpu.memory_space<vmem>>, %arg5: memref<1x128xf32, #tpu.memory_space<vmem>>, %arg6: memref<16x128xf32, #tpu.memory_space<vmem>>, %arg7: memref<16x128xf32, #tpu.memory_space<vmem>>) attributes {dimension_semantics = [#tpu.dimension_semantics<parallel>, #tpu.dimension_semantics<parallel>, #tpu.dimension_semantics<arbitrary>], iteration_bounds = array<i64: 1, 1, 1>, scalar_prefetch = 0 : i64, scratch_operands = 1 : i64, tpu.core_type = #tpu.core_type<tc>, window_params = [{transform_indices = @transform_0, window_bounds = array<i64: 16, 128>}, {transform_indices = @transform_1, window_bounds = array<i64: 128, 128>}, {transform_indices = @transform_2, window_bounds = array<i64: 1, 128>}, {transform_indices = @transform_3, window_bounds = array<i64: 16, 128>}]} {
    %c0_i32 = arith.constant 0 : i32
    %0 = arith.cmpi eq, %arg2, %c0_i32 : i32
    %1 = arith.extui %0 : i1 to i32
    %c0_i32_0 = arith.constant 0 : i32
    %2 = arith.cmpi ne, %1, %c0_i32_0 : i32
    scf.if %2 {
      %cst_10 = arith.constant 0.000000e+00 : f32
      %14 = vector.broadcast %cst_10 : f32 to vector<16x128xf32>
      %c0_11 = arith.constant 0 : index
      %c0_12 = arith.constant 0 : index
      %15 = vector.load %arg7[%c0_11, %c0_12] : memref<16x128xf32, #tpu.memory_space<vmem>>, vector<16x128xf32>
      tpu.vector_store %arg7[%c0_11, %c0_12], %14 {strides = array<i32>} : memref<16x128xf32, #tpu.memory_space<vmem>>, vector<16x128xf32>,
    } else {
    }
    %c0 = arith.constant 0 : index
    %c0_1 = arith.constant 0 : index
    %3 = vector.load %arg7[%c0, %c0_1] : memref<16x128xf32, #tpu.memory_space<vmem>>, vector<16x128xf32>
    %c0_2 = arith.constant 0 : index
    %c0_3 = arith.constant 0 : index
    %4 = vector.load %arg3[%c0_2, %c0_3] : memref<16x128xf32, #tpu.memory_space<vmem>>, vector<16x128xf32>
    %5 = arith.truncf %4 : vector<16x128xf32> to vector<16x128xbf16>
    %c0_4 = arith.constant 0 : index
    %c0_5 = arith.constant 0 : index
    %6 = vector.load %arg4[%c0_4, %c0_5] : memref<128x128xf32, #tpu.memory_space<vmem>>, vector<128x128xf32>
    %7 = arith.truncf %6 : vector<128x128xf32> to vector<128x128xbf16>
    %cst = arith.constant dense<0.000000e+00> : vector<16x128xf32>
    %8 = tpu.matmul %5, %7, %cst {dimension_numbers = #tpu.dot_dimension_numbers<[1], [0], [0], [1], [0, 0, 1, 1], [], []>} : vector<16x128xbf16>, vector<128x128xbf16>, vector<16x128xf32> -> vector<16x128xf32>
    %9 = arith.addf %3, %8 : vector<16x128xf32>
    %c0_6 = arith.constant 0 : index
    %c0_7 = arith.constant 0 : index
    %10 = vector.load %arg7[%c0_6, %c0_7] : memref<16x128xf32, #tpu.memory_space<vmem>>, vector<16x128xf32>
    tpu.vector_store %arg7[%c0_6, %c0_7], %9 {strides = array<i32>} : memref<16x128xf32, #tpu.memory_space<vmem>>, vector<16x128xf32>,
    %c0_i32_8 = arith.constant 0 : i32
    %11 = arith.cmpi eq, %arg2, %c0_i32_8 : i32
    %12 = arith.extui %11 : i1 to i32
    %c0_i32_9 = arith.constant 0 : i32
    %13 = arith.cmpi ne, %12, %c0_i32_9 : i32
    scf.if %13 {
      %c0_10 = arith.constant 0 : index
      %c0_11 = arith.constant 0 : index
      %14 = vector.load %arg7[%c0_10, %c0_11] : memref<16x128xf32, #tpu.memory_space<vmem>>, vector<16x128xf32>
      %c0_12 = arith.constant 0 : index
      %c0_13 = arith.constant 0 : index
      %15 = vector.load %arg5[%c0_12, %c0_13] : memref<1x128xf32, #tpu.memory_space<vmem>>, vector<1x128xf32>
      %16 = vector.broadcast %15 : vector<1x128xf32> to vector<16x128xf32>
      %17 = arith.addf %14, %16 : vector<16x128xf32>
      %c0_14 = arith.constant 0 : index
      %c0_15 = arith.constant 0 : index
      %18 = vector.load %arg6[%c0_14, %c0_15] : memref<16x128xf32, #tpu.memory_space<vmem>>, vector<16x128xf32>
      tpu.vector_store %arg6[%c0_14, %c0_15], %17 {strides = array<i32>} : memref<16x128xf32, #tpu.memory_space<vmem>>, vector<16x128xf32>,
    } else {
    }
    return
  }
  func.func @transform_0(%arg0: i32, %arg1: i32, %arg2: i32) -> (i32, i32) {
    %c0_i32 = arith.constant 0 : i32
    return %arg0, %arg2 : i32, i32
  }
  func.func @transform_1(%arg0: i32, %arg1: i32, %arg2: i32) -> (i32, i32) {
    %c0_i32 = arith.constant 0 : i32
    return %arg2, %arg1 : i32, i32
  }
  func.func @transform_2(%arg0: i32, %arg1: i32, %arg2: i32) -> (i32, i32) {
    %c0_i32 = arith.constant 0 : i32
    %c0_i32_0 = arith.constant 0 : i32
    return %c0_i32, %arg1 : i32, i32
  }
  func.func @transform_3(%arg0: i32, %arg1: i32, %arg2: i32) -> (i32, i32) {
    %c0_i32 = arith.constant 0 : i32
    return %arg0, %arg1 : i32, i32
  }
}

</mosaic_0001>

<llo_original>
// kernel: tpu_custom_call.1
$region0: #{tpu_custom_call.1}
  #allocation0 [shape = 'u32[]', space=smem, size = 0x4, offset = 0x4, fixed_abs, tag = 'smem constant byte address 0x4 - core index']
  #allocation1 [shape = 'u32[72,128]{1,0:T(1,128)}', space=vmem, size = 0x9000, scoped, tag = 'internal scratch']
  #allocation2 [shape = 'f32[16,128]{1,0:T(8,128)}', space=vmem, size = 0x2000, scoped, tag = 'scratch operand']
  %s0 = inlined_call_operand.hbm [shape: f32[16,128], index: 0, kind: input, shape index: {}]
  %s1 = inlined_call_operand.hbm [shape: f32[128,128], index: 1, kind: input, shape index: {}]
  %s2 = inlined_call_operand.vmem [shape: f32[1,128], index: 2, kind: input, shape index: {}]
  %s3 = inlined_call_operand.hbm [shape: f32[16,128], index: 3, kind: output, shape index: {}]
  %s4 = sld [smem:[#allocation0]]
  $region38: #{tpu_custom_call.1} parent=0
    _
  %s6 = ssub.s32 1, %s4
  %s7 = scalar_select 0, %s6, %s4
  $region1: #{tpu_custom_call.1} parent=0
    #allocation3 [shape = 'u8[8192]{0}', space=vmem, size = 0x2000, scoped, tag = 'input window, operand 0, single buffered']
    #allocation4 [shape = 's32[1]{0}', space=sflag, size = 0x4, scoped, tag = 'scoped memory for tpu_custom_call.1']
    #allocation5 [shape = 's32[1]{0}', space=sflag, size = 0x4, scoped, tag = 'scoped memory for tpu_custom_call.1']
    #allocation6 [shape = 'u8[65536]{0}', space=vmem, size = 0x10000, scoped, tag = 'input window, operand 1, single buffered']
    #allocation7 [shape = 's32[1]{0}', space=sflag, size = 0x4, scoped, tag = 'scoped memory for tpu_custom_call.1']
    #allocation8 [shape = 'u8[8192]{0}', space=vmem, size = 0x2000, scoped, tag = 'output window, operand 0, single buffered']
    %8 = vsyncpa [#allocation4], 0
    %9 = vsyncpa [#allocation7], 0
    %10 = vsyncpa [#allocation5], 0
    // Predicated region
    $region2: #{tpu_custom_call.1} parent=1 // pred_check
      _
    $region3: #{tpu_custom_call.1} parent=1 // pred_check_branch
      %12 = sbr.rel (0) target = $region5
    $region4: #{tpu_custom_call.1} parent=1 // pred_region
      %14 = vsyncadd [#allocation4], 0
      %s15 = sshll.u32 %s0, 4
      %s16 = int_to_ptr.hbm [resolvable:$true] %s15
      %s17 = sshll.u32 [#allocation3], 4
      %s18 = int_to_ptr.vmem [resolvable:$true] %s17
      %23 = dma.hbm_to_vmem [thread:$0]  %s16, 256, %s18, [#allocation4], 128, 128, 8
    $region5: #{tpu_custom_call.1} parent=1 // pred_fallthru
      _
    // Predicated region
    $region6: #{tpu_custom_call.1} parent=1 // pred_check
      _
    $region7: #{tpu_custom_call.1} parent=1 // pred_check_branch
      %25 = sbr.rel (0) target = $region9
    $region8: #{tpu_custom_call.1} parent=1 // pred_region
      %27 = vsyncadd [#allocation7], 0
      %s28 = sshll.u32 %s1, 4
      %s29 = int_to_ptr.hbm [resolvable:$true] %s28
      %s30 = sshll.u32 [#allocation6], 4
      %s31 = int_to_ptr.vmem [resolvable:$true] %s30
      %36 = dma.hbm_to_vmem [thread:$0]  %s29, 2048, %s31, [#allocation7], 128, 128, 8
    $region9: #{tpu_custom_call.1} parent=1 // pred_fallthru
      _
    // Predicated region
    $region10: #{tpu_custom_call.1} parent=1 // pred_check
      _
    $region11: #{tpu_custom_call.1} parent=1 // pred_check_branch
      %38 = sbr.rel (0) target = $region13
    $region12: #{tpu_custom_call.1} parent=1 // pred_region
      _
    $region13: #{tpu_custom_call.1} parent=1 // pred_fallthru
      _
    // Predicated region
    $region14: #{tpu_custom_call.1} parent=1 // pred_check
      _
    $region15: #{tpu_custom_call.1} parent=1 // pred_check_branch
      %40 = sbr.rel (0) target = $region17
    $region16: #{tpu_custom_call.1} parent=1 // pred_region
      %42 = dma.done [#allocation4], 256
    $region17: #{tpu_custom_call.1} parent=1 // pred_fallthru
      _
    // Predicated region
    $region18: #{tpu_custom_call.1} parent=1 // pred_check
      _
    $region19: #{tpu_custom_call.1} parent=1 // pred_check_branch
      %44 = sbr.rel (0) target = $region21
    $region20: #{tpu_custom_call.1} parent=1 // pred_region
      %46 = dma.done [#allocation7], 2048
    $region21: #{tpu_custom_call.1} parent=1 // pred_fallthru
      _
    %p47 = scmp.eq.s32.totalorder 0, 0
    // Predicated region
    $region22: #{tpu_custom_call.1} parent=1 // pred_check
      %p48 = pneg %p47
    $region23: #{tpu_custom_call.1} parent=1 // pred_check_branch
      %50 = sbr.rel (%p48) target = $region25
    $region24: #{tpu_custom_call.1} parent=1 // pred_region
      %51 = vst [vmem:[#allocation2] sm:$0xff] 0.0
      %52 = vst [vmem:[#allocation2 + $0x8] sm:$0xff] 0.0
    $region25: #{tpu_custom_call.1} parent=1 // pred_fallthru
      _
    %v53 = vld [vmem:[#allocation2] sm:$0xff]
    %v54 = vld [vmem:[#allocation2 + $0x8] sm:$0xff]
    %v55 = vld [vmem:[#allocation3] sm:$0xff]
    %v56 = vld [vmem:[#allocation3 + $0x8] sm:$0xff]
    %v57 = vpack.c.bf16 %v56, %v55
    %v58 = vld [vmem:[#allocation6] sm:$0xff]
    %v59 = vld [vmem:[#allocation6 + $0x8] sm:$0xff]
    %v60 = vld [vmem:[#allocation6 + $0x10] sm:$0xff]
    %v61 = vld [vmem:[#allocation6 + $0x18] sm:$0xff]
    %v62 = vld [vmem:[#allocation6 + $0x20] sm:$0xff]
    %v63 = vld [vmem:[#allocation6 + $0x28] sm:$0xff]
    %v64 = vld [vmem:[#allocation6 + $0x30] sm:$0xff]
    %v65 = vld [vmem:[#allocation6 + $0x38] sm:$0xff]
    %v66 = vld [vmem:[#allocation6 + $0x40] sm:$0xff]
    %v67 = vld [vmem:[#allocation6 + $0x48] sm:$0xff]
    %v68 = vld [vmem:[#allocation6 + $0x50] sm:$0xff]
    %v69 = vld [vmem:[#allocation6 + $0x58] sm:$0xff]
    %v70 = vld [vmem:[#allocation6 + $0x60] sm:$0xff]
    %v71 = vld [vmem:[#allocation6 + $0x68] sm:$0xff]
    %v72 = vld [vmem:[#allocation6 + $0x70] sm:$0xff]
    %v73 = vld [vmem:[#allocation6 + $0x78] sm:$0xff]
    %v74 = vpack.c.bf16 %v59, %v58
    %v75 = vpack.c.bf16 %v61, %v60
    %v76 = vpack.c.bf16 %v63, %v62
    %v77 = vpack.c.bf16 %v65, %v64
    %v78 = vpack.c.bf16 %v67, %v66
    %v79 = vpack.c.bf16 %v69, %v68
    %v80 = vpack.c.bf16 %v71, %v70
    %v81 = vpack.c.bf16 %v73, %v72
    %82 = vmatpush.bf16.msra.mxu0 %v81
    %83 = vmatpush.bf16.msra.mxu0 %v80
    %84 = vmatpush.bf16.msra.mxu0 %v79
    %85 = vmatpush.bf16.msra.mxu0 %v78
    %86 = vmatpush.bf16.msra.mxu0 %v77
    %87 = vmatpush.bf16.msra.mxu0 %v76
    %88 = vmatpush.bf16.msra.mxu0 %v75
    %89 = vmatpush.bf16.msra.mxu0 %v74
    %90 = vmatmul.bf16.gmra.mxu0 %v57
    %v91 = vpop.f32.mrf.mxu0
    %v92 = vadd.f32 0.0, %v91
    %v93 = vpop.f32.mrf.mxu0
    %v94 = vadd.f32 0.0, %v93
    %95 = vdwg.mxu0
    %v96 = vadd.f32 %v53, %v92
    %v97 = vadd.f32 %v54, %v94
    %98 = vst [vmem:[#allocation2] sm:$0xff] %v96
    %99 = vst [vmem:[#allocation2 + $0x8] sm:$0xff] %v97
    // Predicated region
    $region26: #{tpu_custom_call.1} parent=1 // pred_check
      %p100 = pneg %p47
    $region27: #{tpu_custom_call.1} parent=1 // pred_check_branch
      %102 = sbr.rel (%p100) target = $region29
    $region28: #{tpu_custom_call.1} parent=1 // pred_region
      %v103 = vld [vmem:[#allocation2] sm:$0xff]
      %v104 = vld [vmem:[#allocation2 + $0x8] sm:$0xff]
      %v105 = vld [vmem:[%s2] sm:$0x1]
      %v107 = vperm.slane %v105, 0
      %v109 = vadd.f32 %v103, %v107
      %v110 = vadd.f32 %v104, %v107
      %111 = vst [vmem:[#allocation8] sm:$0xff] %v109
      %112 = vst [vmem:[#allocation8 + $0x8] sm:$0xff] %v110
    $region29: #{tpu_custom_call.1} parent=1 // pred_fallthru
      _
    // Predicated region
    $region30: #{tpu_custom_call.1} parent=1 // pred_check
      _
    $region31: #{tpu_custom_call.1} parent=1 // pred_check_branch
      %114 = sbr.rel (0) target = $region33
    $region32: #{tpu_custom_call.1} parent=1 // pred_region
      %116 = vsyncadd [#allocation5], 0
      %s117 = sshll.u32 [#allocation8], 4
      %s118 = int_to_ptr.vmem [resolvable:$true] %s117
      %s119 = sshll.u32 %s3, 4
      %s120 = int_to_ptr.hbm [resolvable:$true] %s119
      %125 = dma.vmem_to_hbm [thread:$0]  %s118, 256, %s120, [#allocation5], 128, 128, 8
    $region33: #{tpu_custom_call.1} parent=1 // pred_fallthru
      _
    // Predicated region
    $region34: #{tpu_custom_call.1} parent=1 // pred_check
      _
    $region35: #{tpu_custom_call.1} parent=1 // pred_check_branch
      %127 = sbr.rel (0) target = $region37
    $region36: #{tpu_custom_call.1} parent=1 // pred_region
      %129 = dma.done [#allocation5], 256
    $region37: #{tpu_custom_call.1} parent=1 // pred_fallthru
      _
    %130 = vsyncpa [#allocation4], 1
    %131 = vsyncpa [#allocation7], 1
    %132 = vsyncpa [#allocation5], 1

</llo_original>
